<compile_context>
chip_gen: v6e
topology: v6e:2x2x1
jax: 0.10.0
libtpu: 0.0.40
codegen_flags: <defaults>
</compile_context>

<pallas_src>
import functools
import math

import jax
import jax.numpy as jnp
from jax import lax
from jax.experimental import pallas as pl
from jax.experimental.pallas import tpu as pltpu


def _head_kernel(x_ref, ws_ref, wv_ref, bv_ref, wo_ref, bo_ref,
                 gamma_ref, beta_ref, o_ref, *, d_model, tb, n):
    """One grid step = tb batch elements; x arrives pre-flattened (tb*n, Dp)."""
    Dp = wv_ref.shape[1]
    x = x_ref[...]                                            # (tb*n, Dp)

    # --- attention scores ------------------------------------------------------
    # Entire K projection folded into ws = q_scaled @ wk (precomputed in wrapper).
    # VPU multiply + lane reduce; the q·bk constant is dropped (softmax-invariant).
    s = jnp.sum(x * ws_ref[...], axis=-1, keepdims=True)      # (tb*n, 1) f32
    s = s.reshape(tb, n)                                      # (tb, n)

    # --- softmax over the n keys per batch element (f32) -----------------------
    m = jnp.max(s, axis=-1, keepdims=True)
    p = jnp.exp(s - m)
    attn = p * pl.reciprocal(jnp.sum(p, axis=-1, keepdims=True), approx=True)

    # --- V projection: one (tb*n, Dp) @ (Dp, Dp) MXU matmul, f32 accumulation --
    v = jnp.dot(x, wv_ref[...], preferred_element_type=jnp.float32) + bv_ref[...]
    v = v.reshape(tb, n, Dp)

    # --- context: VPU weighted sum (an M=1 batched matmul would waste the MXU) -
    ctx = jnp.sum(attn[:, :, None] * v, axis=1)               # (tb, Dp) f32

    # --- output projection (pre-transposed wo, f32 accumulation) ---------------
    out = jnp.dot(ctx.astype(wo_ref.dtype), wo_ref[...],
                  preferred_element_type=jnp.float32) + bo_ref[...]   # (tb, Dp)

    # dropout is identity in eval/inference mode (no-op here).

    # --- LayerNorm over the true d_model (padded lanes are exact zeros) --------
    inv_d = 1.0 / d_model
    mean = jnp.sum(out, axis=-1, keepdims=True) * inv_d
    ex2 = jnp.sum(out * out, axis=-1, keepdims=True) * inv_d
    var = ex2 - mean * mean                                   # biased variance
    y = (out - mean) * lax.rsqrt(var + 1e-5) * gamma_ref[...] + beta_ref[...]

    o_ref[...] = y.astype(o_ref.dtype)                        # lane-dense (tb, Dp)


def _device_kind():
    try:
        return jax.devices()[0].device_kind.lower()
    except Exception:
        return ""


def _pick_tb(batch, seq, *, rows_target=None, min_steps=None):
    """Batch elements per grid step.  Generation-aware:
    - rows_target 128 on v5e (4x128^2 MXU), 256 on v6e/v7x (2x256^2 MXU),
    - >=2 grid steps only attempted on v7x (2 TensorCores/chip),
    - tb must divide batch and be either == batch or a multiple of 8 so every
      input/output block satisfies the (8,128) block rule without masking."""
    kind = _device_kind()
    if rows_target is None:
        rows_target = 128 if ("v5e" in kind or "v5 lite" in kind) else 256
    if min_steps is None:
        min_steps = 2 if "v7" in kind else 1

    cands = [d for d in range(1, batch + 1)
             if batch % d == 0 and (d == batch or d % 8 == 0)]
    max_rows = max(rows_target, seq)                 # always >= one batch element
    fitting = [d for d in cands if d * seq <= max_rows]
    tb = max(fitting) if fitting else min(cands)
    if min_steps > 1:                                # v7x: give both TCs work
        smaller = [d for d in cands
                   if batch // d >= min_steps and d * seq <= max_rows]
        if smaller:
            tb = max(smaller)
    return tb


def _pack_params(params, matmul_dtype, d_pad):
    """Wrapper-side (free) parameter preprocessing:
    - hoist the batch-invariant q projection, fold bq and 1/sqrt(D) into it,
    - fold the whole K projection into ws = q_scaled @ wk (1, D),
    - pre-transpose wv / wo, cast matmul weights to the MXU operand dtype,
    - zero-pad everything out to d_pad lanes (multiple of 128)."""
    D = params["wq"].shape[0]
    gt = params["global_token"].reshape(1, D)
    q_scaled = (gt @ params["wq"].T + params["bq"]) * (1.0 / math.sqrt(D))
    ws = q_scaled @ params["wk"]                              # (1, D)

    def pc(a):   # pad columns of a (r, D) row vector
        return a if a.shape[-1] == d_pad else jnp.pad(
            a, ((0, 0), (0, d_pad - a.shape[-1])))

    def pm(a):   # pad a (D, D) matrix to (d_pad, d_pad)
        return a if a.shape == (d_pad, d_pad) else jnp.pad(
            a, ((0, d_pad - a.shape[0]), (0, d_pad - a.shape[1])))

    return dict(
        ws=pc(ws).astype(jnp.float32),                        # (1, Dp)
        wv_t=pm(params["wv"].T).astype(matmul_dtype),         # (Dp, Dp)
        bv=pc(params["bv"]).astype(jnp.float32),              # (1, Dp)
        wo_t=pm(params["wo"].T).astype(matmul_dtype),         # (Dp, Dp)
        bo=pc(params["bo"]).astype(jnp.float32),              # (1, Dp)
        gamma=pc(params["gamma"]).astype(jnp.float32),        # (1, Dp)
        beta=pc(params["beta"]).astype(jnp.float32),          # (1, Dp)
    )


def enhanced_network_head(x, params, *, matmul_dtype=jnp.bfloat16, tb=None):
    """x: (B, N, D) float32. params: dict of weights. Returns (B, 1, D) f32."""
    B, N, D = x.shape
    Dp = ((D + 127) // 128) * 128           # lane-pad d_model to a multiple of 128
    pp = _pack_params(params, matmul_dtype, Dp)
    if tb is None:
        tb = _pick_tb(B, N)
    assert B % tb == 0 and (tb == B or tb % 8 == 0), "invalid batch tile"

    # Flatten + pad x in the wrapper (cheap XLA ops) so the kernel never
    # reshapes across the sublane dimension.
    xf = x.reshape(B * N, D).astype(matmul_dtype)
    if Dp != D:
        xf = jnp.pad(xf, ((0, 0), (0, Dp - D)))

    itm = jnp.dtype(matmul_dtype).itemsize
    # VMEM budget: double-buffered x/out tiles + single-buffered weights +
    # f32 intermediates, 2x headroom; floor 32 MiB, cap 64 MiB (v7x physical).
    est = (2 * tb * N * Dp * itm + 2 * Dp * Dp * itm + 2 * tb * Dp * 4
           + 16 * Dp * 4 + 2 * tb * N * Dp * 4 + 8 * tb * Dp * 4)
    vmem_limit = int(min(max(32 << 20, 2 * est), 64 << 20))

    cost = pl.CostEstimate(
        flops=int(2 * B * N * Dp * Dp + 2 * B * Dp * Dp + 2 * B * N * Dp
                  + 10 * B * Dp),
        transcendentals=int(B * N + B),
        bytes_accessed=int(B * N * Dp * itm + 2 * Dp * Dp * itm
                           + B * Dp * 4 + 8 * Dp * 4),
    )

    kern = functools.partial(_head_kernel, d_model=D, tb=tb, n=N)

    def build_and_call(single_buffer_weights):
        def const_spec(shape, big):
            if big and single_buffer_weights:
                # Grid-invariant weights: 1-deep buffering halves their resident
                # VMEM footprint (matters for large D on v7x / v5e scoped limits).
                return pl.BlockSpec(shape, lambda b: (0, 0),
                                    pipeline_mode=pl.Buffered(1))
            return pl.BlockSpec(shape, lambda b: (0, 0))

        in_specs = [
            pl.BlockSpec((tb * N, Dp), lambda b: (b, 0)),   # x (flattened, padded)
            const_spec((1, Dp), False),                     # ws (folded K-proj)
            const_spec((Dp, Dp), True),                     # wv_t
            const_spec((1, Dp), False),                     # bv
            const_spec((Dp, Dp), True),                     # wo_t
            const_spec((1, Dp), False),                     # bo
            const_spec((1, Dp), False),                     # ln gamma
            const_spec((1, Dp), False),                     # ln beta
        ]
        return pl.pallas_call(
            kern,
            out_shape=jax.ShapeDtypeStruct((B, Dp), jnp.float32),
            grid_spec=pltpu.PrefetchScalarGridSpec(
                num_scalar_prefetch=0,
                grid=(B // tb,),
                in_specs=in_specs,
                out_specs=pl.BlockSpec((tb, Dp), lambda b: (b, 0)),
            ),
            compiler_params=pltpu.CompilerParams(
                dimension_semantics=("parallel",),
                vmem_limit_bytes=vmem_limit),
            cost_estimate=cost,
        )(xf, pp["ws"], pp["wv_t"], pp["bv"], pp["wo_t"], pp["bo"],
          pp["gamma"], pp["beta"])

    try:
        out = build_and_call(True)
    except Exception:
        # Fallback if this JAX build rejects pipeline_mode=pl.Buffered(1);
        # a genuine kernel bug re-raises identically on the retry.
        out = build_and_call(False)

    return out[:, :D].reshape(B, 1, D)


def init_params(key, d_model):
    """Deterministic synthetic parameters matching nn.MultiheadAttention +
    nn.LayerNorm shapes (in_proj split into q/k/v; out_proj with bias)."""
    ks = jax.random.split(key, 6)
    s = 1.0 / math.sqrt(d_model)
    return dict(
        global_token=jax.random.normal(ks[0], (1, 1, d_model), jnp.float32),
        wq=jax.random.normal(ks[1], (d_model, d_model), jnp.float32) * s,
        wk=jax.random.normal(ks[2], (d_model, d_model), jnp.float32) * s,
        wv=jax.random.normal(ks[3], (d_model, d_model), jnp.float32) * s,
        wo=jax.random.normal(ks[4], (d_model, d_model), jnp.float32) * s,
        bq=jnp.zeros((1, d_model), jnp.float32),
        bk=jnp.zeros((1, d_model), jnp.float32),
        bv=jnp.zeros((1, d_model), jnp.float32),
        bo=jax.random.normal(ks[5], (1, d_model), jnp.float32) * 0.01,
        gamma=jnp.ones((1, d_model), jnp.float32),
        beta=jnp.zeros((1, d_model), jnp.float32),
    )


def _reference(x, p):
    """Pure-JAX f32 reference of the same forward pass (for sanity check)."""
    B, N, D = x.shape
    gt = jnp.broadcast_to(p["global_token"], (B, 1, D))
    q = gt @ p["wq"].T + p["bq"]
    k = x @ p["wk"].T + p["bk"]
    v = x @ p["wv"].T + p["bv"]
    scores = jnp.einsum("bqd,bkd->bqk", q, k) / math.sqrt(D)
    attn = jax.nn.softmax(scores, axis=-1)
    ctx = jnp.einsum("bqk,bkd->bqd", attn, v)
    out = ctx @ p["wo"].T + p["bo"]
    mean = jnp.mean(out, axis=-1, keepdims=True)
    var = jnp.mean((out - mean) ** 2, axis=-1, keepdims=True)
    return (out - mean) * lax.rsqrt(var + 1e-5) * p["gamma"] + p["beta"]


if __name__ == "__main__":
    key = jax.random.PRNGKey(0)

    # Config 1: module-scale shapes; D=32 exercises the lane-padding path.
    B, N, D = 2, 8, 32
    kx, kp, key = jax.random.split(key, 3)
    x = jax.random.normal(kx, (B, N, D), jnp.float32)
    params = init_params(kp, D)
    y_ref = _reference(x, params)

    # Tight check with f32 matmul operands (exactness of the restructuring).
    y_f32 = enhanced_network_head(x, params, matmul_dtype=jnp.float32)
    jax.block_until_ready(y_f32)
    assert y_f32.shape == (B, 1, D)
    assert jnp.allclose(y_f32, y_ref, atol=3e-3, rtol=3e-3)

    # Production path: bf16 MXU operands, f32 accumulation / softmax / LayerNorm.
    y = enhanced_network_head(x, params)
    jax.block_until_ready(y)
    assert y.shape == (B, 1, D)
    assert jnp.allclose(y, y_ref, atol=6e-2, rtol=6e-2)

    # Config 2: lane-aligned D, larger batch (exercises tb%8 blocks; grid>1 on v7x).
    B2, N2, D2 = 16, 8, 128
    kx2, kp2 = jax.random.split(key)
    x2 = jax.random.normal(kx2, (B2, N2, D2), jnp.float32)
    params2 = init_params(kp2, D2)
    y2 = enhanced_network_head(x2, params2)
    jax.block_until_ready(y2)
    assert y2.shape == (B2, 1, D2)
    assert jnp.allclose(y2, _reference(x2, params2), atol=6e-2, rtol=6e-2)

    print("KERNEL_OK")
</pallas_src>

<mosaic_0001>
module attributes {stable_mosaic.version = 11 : i64} {
  func.func @_head_kernel(%arg0: i32, %arg1: memref<16x128xf32, #tpu.memory_space<vmem>>, %arg2: memref<1x128xf32, #tpu.memory_space<vmem>>, %arg3: memref<128x128xf32, #tpu.memory_space<vmem>>, %arg4: memref<1x128xf32, #tpu.memory_space<vmem>>, %arg5: memref<128x128xf32, #tpu.memory_space<vmem>>, %arg6: memref<1x128xf32, #tpu.memory_space<vmem>>, %arg7: memref<1x128xf32, #tpu.memory_space<vmem>>, %arg8: memref<1x128xf32, #tpu.memory_space<vmem>>, %arg9: memref<2x128xf32, #tpu.memory_space<vmem>>) attributes {dimension_semantics = [#tpu.dimension_semantics<parallel>], iteration_bounds = array<i64: 1>, scalar_prefetch = 0 : i64, scratch_operands = 0 : i64, tpu.core_type = #tpu.core_type<tc>, window_params = [{transform_indices = @transform_0, window_bounds = array<i64: 16, 128>}, {pipeline_mode = #tpu.pipeline_mode<synchronous>, transform_indices = @transform_1, window_bounds = array<i64: 1, 128>}, {pipeline_mode = #tpu.pipeline_mode<synchronous>, transform_indices = @transform_2, window_bounds = array<i64: 128, 128>}, {pipeline_mode = #tpu.pipeline_mode<synchronous>, transform_indices = @transform_3, window_bounds = array<i64: 1, 128>}, {pipeline_mode = #tpu.pipeline_mode<synchronous>, transform_indices = @transform_4, window_bounds = array<i64: 128, 128>}, {pipeline_mode = #tpu.pipeline_mode<synchronous>, transform_indices = @transform_5, window_bounds = array<i64: 1, 128>}, {pipeline_mode = #tpu.pipeline_mode<synchronous>, transform_indices = @transform_6, window_bounds = array<i64: 1, 128>}, {pipeline_mode = #tpu.pipeline_mode<synchronous>, transform_indices = @transform_7, window_bounds = array<i64: 1, 128>}, {transform_indices = @transform_8, window_bounds = array<i64: 2, 128>}]} {
    %c0 = arith.constant 0 : index
    %c0_0 = arith.constant 0 : index
    %0 = vector.load %arg1[%c0, %c0_0] : memref<16x128xf32, #tpu.memory_space<vmem>>, vector<16x128xf32>
    %c0_1 = arith.constant 0 : index
    %c0_2 = arith.constant 0 : index
    %1 = vector.load %arg2[%c0_1, %c0_2] : memref<1x128xf32, #tpu.memory_space<vmem>>, vector<1x128xf32>
    %2 = vector.broadcast %1 : vector<1x128xf32> to vector<16x128xf32>
    %3 = arith.mulf %0, %2 : vector<16x128xf32>
    %cst = arith.constant dense<0.000000e+00> : vector<16xf32>
    %4 = vector.multi_reduction <add>, %3, %cst [1] : vector<16x128xf32> to vector<16xf32>
    %5 = vector.shape_cast %4 : vector<16xf32> to vector<16x1xf32>
    %6 = vector.shape_cast %5 : vector<16x1xf32> to vector<2x8xf32>
    %cst_3 = arith.constant dense<0xFF800000> : vector<2xf32>
    %7 = vector.multi_reduction <maximumf>, %6, %cst_3 [1] : vector<2x8xf32> to vector<2xf32>
    %8 = vector.shape_cast %7 : vector<2xf32> to vector<2x1xf32>
    %9 = vector.broadcast %8 : vector<2x1xf32> to vector<2x8xf32>
    %10 = arith.subf %6, %9 : vector<2x8xf32>
    %11 = math.exp %10 : vector<2x8xf32>
    %cst_4 = arith.constant dense<0.000000e+00> : vector<2xf32>
    %12 = vector.multi_reduction <add>, %11, %cst_4 [1] : vector<2x8xf32> to vector<2xf32>
    %13 = vector.shape_cast %12 : vector<2xf32> to vector<2x1xf32>
    %14 = tpu.reciprocal %13 {approx = true} : vector<2x1xf32> -> vector<2x1xf32>
    %15 = vector.broadcast %14 : vector<2x1xf32> to vector<2x8xf32>
    %16 = arith.mulf %11, %15 : vector<2x8xf32>
    %c0_5 = arith.constant 0 : index
    %c0_6 = arith.constant 0 : index
    %17 = vector.load %arg3[%c0_5, %c0_6] : memref<128x128xf32, #tpu.memory_space<vmem>>, vector<128x128xf32>
    %cst_7 = arith.constant dense<0.000000e+00> : vector<16x128xf32>
    %18 = tpu.matmul %0, %17, %cst_7 {dimension_numbers = #tpu.dot_dimension_numbers<[1], [0], [0], [1], [0, 0, 1, 1], [], []>} : vector<16x128xf32>, vector<128x128xf32>, vector<16x128xf32> -> vector<16x128xf32>
    %c0_8 = arith.constant 0 : index
    %c0_9 = arith.constant 0 : index
    %19 = vector.load %arg4[%c0_8, %c0_9] : memref<1x128xf32, #tpu.memory_space<vmem>>, vector<1x128xf32>
    %20 = vector.broadcast %19 : vector<1x128xf32> to vector<16x128xf32>
    %21 = arith.addf %18, %20 : vector<16x128xf32>
    %22 = vector.shape_cast %21 : vector<16x128xf32> to vector<2x8x128xf32>
    %23 = vector.shape_cast %16 : vector<2x8xf32> to vector<2x8x1xf32>
    %24 = vector.broadcast %23 : vector<2x8x1xf32> to vector<2x8x128xf32>
    %25 = arith.mulf %24, %22 : vector<2x8x128xf32>
    %cst_10 = arith.constant dense<0.000000e+00> : vector<2x128xf32>
    %26 = vector.multi_reduction <add>, %25, %cst_10 [1] : vector<2x8x128xf32> to vector<2x128xf32>
    %c0_11 = arith.constant 0 : index
    %c0_12 = arith.constant 0 : index
    %27 = vector.load %arg5[%c0_11, %c0_12] : memref<128x128xf32, #tpu.memory_space<vmem>>, vector<128x128xf32>
    %cst_13 = arith.constant dense<0.000000e+00> : vector<2x128xf32>
    %28 = tpu.matmul %26, %27, %cst_13 {dimension_numbers = #tpu.dot_dimension_numbers<[1], [0], [0], [1], [0, 0, 1, 1], [], []>} : vector<2x128xf32>, vector<128x128xf32>, vector<2x128xf32> -> vector<2x128xf32>
    %c0_14 = arith.constant 0 : index
    %c0_15 = arith.constant 0 : index
    %29 = vector.load %arg6[%c0_14, %c0_15] : memref<1x128xf32, #tpu.memory_space<vmem>>, vector<1x128xf32>
    %30 = vector.broadcast %29 : vector<1x128xf32> to vector<2x128xf32>
    %31 = arith.addf %28, %30 : vector<2x128xf32>
    %cst_16 = arith.constant dense<0.000000e+00> : vector<2xf32>
    %32 = vector.multi_reduction <add>, %31, %cst_16 [1] : vector<2x128xf32> to vector<2xf32>
    %33 = vector.shape_cast %32 : vector<2xf32> to vector<2x1xf32>
    %cst_17 = arith.constant 3.125000e-02 : f32
    %34 = vector.broadcast %cst_17 : f32 to vector<2x1xf32>
    %35 = arith.mulf %33, %34 : vector<2x1xf32>
    %36 = arith.mulf %31, %31 : vector<2x128xf32>
    %cst_18 = arith.constant dense<0.000000e+00> : vector<2xf32>
    %37 = vector.multi_reduction <add>, %36, %cst_18 [1] : vector<2x128xf32> to vector<2xf32>
    %38 = vector.shape_cast %37 : vector<2xf32> to vector<2x1xf32>
    %cst_19 = arith.constant 3.125000e-02 : f32
    %39 = vector.broadcast %cst_19 : f32 to vector<2x1xf32>
    %40 = arith.mulf %38, %39 : vector<2x1xf32>
    %41 = arith.mulf %35, %35 : vector<2x1xf32>
    %42 = arith.subf %40, %41 : vector<2x1xf32>
    %43 = vector.broadcast %35 : vector<2x1xf32> to vector<2x128xf32>
    %44 = arith.subf %31, %43 : vector<2x128xf32>
    %cst_20 = arith.constant 9.99999974E-6 : f32
    %45 = vector.broadcast %cst_20 : f32 to vector<2x1xf32>
    %46 = arith.addf %42, %45 : vector<2x1xf32>
    %47 = math.rsqrt %46 : vector<2x1xf32>
    %48 = vector.broadcast %47 : vector<2x1xf32> to vector<2x128xf32>
    %49 = arith.mulf %44, %48 : vector<2x128xf32>
    %c0_21 = arith.constant 0 : index
    %c0_22 = arith.constant 0 : index
    %50 = vector.load %arg7[%c0_21, %c0_22] : memref<1x128xf32, #tpu.memory_space<vmem>>, vector<1x128xf32>
    %51 = vector.broadcast %50 : vector<1x128xf32> to vector<2x128xf32>
    %52 = arith.mulf %49, %51 : vector<2x128xf32>
    %c0_23 = arith.constant 0 : index
    %c0_24 = arith.constant 0 : index
    %53 = vector.load %arg8[%c0_23, %c0_24] : memref<1x128xf32, #tpu.memory_space<vmem>>, vector<1x128xf32>
    %54 = vector.broadcast %53 : vector<1x128xf32> to vector<2x128xf32>
    %55 = arith.addf %52, %54 : vector<2x128xf32>
    %c0_25 = arith.constant 0 : index
    %c0_26 = arith.constant 0 : index
    %56 = vector.load %arg9[%c0_25, %c0_26] : memref<2x128xf32, #tpu.memory_space<vmem>>, vector<2x128xf32>
    tpu.vector_store %arg9[%c0_25, %c0_26], %55 {strides = array<i32>} : memref<2x128xf32, #tpu.memory_space<vmem>>, vector<2x128xf32>,
    return
  }
  func.func @transform_0(%arg0: i32) -> (i32, i32) {
    %c0_i32 = arith.constant 0 : i32
    %c0_i32_0 = arith.constant 0 : i32
    return %arg0, %c0_i32 : i32, i32
  }
  func.func @transform_1(%arg0: i32) -> (i32, i32) {
    %c0_i32 = arith.constant 0 : i32
    %c0_i32_0 = arith.constant 0 : i32
    %c0_i32_1 = arith.constant 0 : i32
    return %c0_i32, %c0_i32_0 : i32, i32
  }
  func.func @transform_2(%arg0: i32) -> (i32, i32) {
    %c0_i32 = arith.constant 0 : i32
    %c0_i32_0 = arith.constant 0 : i32
    %c0_i32_1 = arith.constant 0 : i32
    return %c0_i32, %c0_i32_0 : i32, i32
  }
  func.func @transform_3(%arg0: i32) -> (i32, i32) {
    %c0_i32 = arith.constant 0 : i32
    %c0_i32_0 = arith.constant 0 : i32
    %c0_i32_1 = arith.constant 0 : i32
    return %c0_i32, %c0_i32_0 : i32, i32
  }
  func.func @transform_4(%arg0: i32) -> (i32, i32) {
    %c0_i32 = arith.constant 0 : i32
    %c0_i32_0 = arith.constant 0 : i32
    %c0_i32_1 = arith.constant 0 : i32
    return %c0_i32, %c0_i32_0 : i32, i32
  }
  func.func @transform_5(%arg0: i32) -> (i32, i32) {
    %c0_i32 = arith.constant 0 : i32
    %c0_i32_0 = arith.constant 0 : i32
    %c0_i32_1 = arith.constant 0 : i32
    return %c0_i32, %c0_i32_0 : i32, i32
  }
  func.func @transform_6(%arg0: i32) -> (i32, i32) {
    %c0_i32 = arith.constant 0 : i32
    %c0_i32_0 = arith.constant 0 : i32
    %c0_i32_1 = arith.constant 0 : i32
    return %c0_i32, %c0_i32_0 : i32, i32
  }
  func.func @transform_7(%arg0: i32) -> (i32, i32) {
    %c0_i32 = arith.constant 0 : i32
    %c0_i32_0 = arith.constant 0 : i32
    %c0_i32_1 = arith.constant 0 : i32
    return %c0_i32, %c0_i32_0 : i32, i32
  }
  func.func @transform_8(%arg0: i32) -> (i32, i32) {
    %c0_i32 = arith.constant 0 : i32
    %c0_i32_0 = arith.constant 0 : i32
    return %arg0, %c0_i32 : i32, i32
  }
}

module attributes {stable_mosaic.version = 11 : i64} {
  func.func @_head_kernel(%arg0: i32, %arg1: memref<16x128xf32, #tpu.memory_space<vmem>>, %arg2: memref<1x128xf32, #tpu.memory_space<vmem>>, %arg3: memref<128x128xf32, #tpu.memory_space<vmem>>, %arg4: memref<1x128xf32, #tpu.memory_space<vmem>>, %arg5: memref<128x128xf32, #tpu.memory_space<vmem>>, %arg6: memref<1x128xf32, #tpu.memory_space<vmem>>, %arg7: memref<1x128xf32, #tpu.memory_space<vmem>>, %arg8: memref<1x128xf32, #tpu.memory_space<vmem>>, %arg9: memref<2x128xf32, #tpu.memory_space<vmem>>) attributes {dimension_semantics = [#tpu.dimension_semantics<parallel>], iteration_bounds = array<i64: 1>, scalar_prefetch = 0 : i64, scratch_operands = 0 : i64, tpu.core_type = #tpu.core_type<tc>, window_params = [{transform_indices = @transform_0, window_bounds = array<i64: 16, 128>}, {pipeline_mode = #tpu.pipeline_mode<synchronous>, transform_indices = @transform_1, window_bounds = array<i64: 1, 128>}, {pipeline_mode = #tpu.pipeline_mode<synchronous>, transform_indices = @transform_2, window_bounds = array<i64: 128, 128>}, {pipeline_mode = #tpu.pipeline_mode<synchronous>, transform_indices = @transform_3, window_bounds = array<i64: 1, 128>}, {pipeline_mode = #tpu.pipeline_mode<synchronous>, transform_indices = @transform_4, window_bounds = array<i64: 128, 128>}, {pipeline_mode = #tpu.pipeline_mode<synchronous>, transform_indices = @transform_5, window_bounds = array<i64: 1, 128>}, {pipeline_mode = #tpu.pipeline_mode<synchronous>, transform_indices = @transform_6, window_bounds = array<i64: 1, 128>}, {pipeline_mode = #tpu.pipeline_mode<synchronous>, transform_indices = @transform_7, window_bounds = array<i64: 1, 128>}, {transform_indices = @transform_8, window_bounds = array<i64: 2, 128>}]} {
    %c0 = arith.constant 0 : index
    %c0_0 = arith.constant 0 : index
    %0 = vector.load %arg1[%c0, %c0_0] : memref<16x128xf32, #tpu.memory_space<vmem>>, vector<16x128xf32>
    %c0_1 = arith.constant 0 : index
    %c0_2 = arith.constant 0 : index
    %1 = vector.load %arg2[%c0_1, %c0_2] : memref<1x128xf32, #tpu.memory_space<vmem>>, vector<1x128xf32>
    %2 = vector.broadcast %1 : vector<1x128xf32> to vector<16x128xf32>
    %3 = arith.mulf %0, %2 : vector<16x128xf32>
    %cst = arith.constant dense<0.000000e+00> : vector<16xf32>
    %4 = vector.multi_reduction <add>, %3, %cst [1] : vector<16x128xf32> to vector<16xf32>
    %5 = vector.shape_cast %4 : vector<16xf32> to vector<16x1xf32>
    %6 = vector.shape_cast %5 : vector<16x1xf32> to vector<2x8xf32>
    %cst_3 = arith.constant dense<0xFF800000> : vector<2xf32>
    %7 = vector.multi_reduction <maximumf>, %6, %cst_3 [1] : vector<2x8xf32> to vector<2xf32>
    %8 = vector.shape_cast %7 : vector<2xf32> to vector<2x1xf32>
    %9 = vector.broadcast %8 : vector<2x1xf32> to vector<2x8xf32>
    %10 = arith.subf %6, %9 : vector<2x8xf32>
    %11 = math.exp %10 : vector<2x8xf32>
    %cst_4 = arith.constant dense<0.000000e+00> : vector<2xf32>
    %12 = vector.multi_reduction <add>, %11, %cst_4 [1] : vector<2x8xf32> to vector<2xf32>
    %13 = vector.shape_cast %12 : vector<2xf32> to vector<2x1xf32>
    %14 = tpu.reciprocal %13 {approx = true} : vector<2x1xf32> -> vector<2x1xf32>
    %15 = vector.broadcast %14 : vector<2x1xf32> to vector<2x8xf32>
    %16 = arith.mulf %11, %15 : vector<2x8xf32>
    %c0_5 = arith.constant 0 : index
    %c0_6 = arith.constant 0 : index
    %17 = vector.load %arg3[%c0_5, %c0_6] : memref<128x128xf32, #tpu.memory_space<vmem>>, vector<128x128xf32>
    %cst_7 = arith.constant dense<0.000000e+00> : vector<16x128xf32>
    %18 = tpu.matmul %0, %17, %cst_7 {dimension_numbers = #tpu.dot_dimension_numbers<[1], [0], [0], [1], [0, 0, 1, 1], [], []>} : vector<16x128xf32>, vector<128x128xf32>, vector<16x128xf32> -> vector<16x128xf32>
    %c0_8 = arith.constant 0 : index
    %c0_9 = arith.constant 0 : index
    %19 = vector.load %arg4[%c0_8, %c0_9] : memref<1x128xf32, #tpu.memory_space<vmem>>, vector<1x128xf32>
    %20 = vector.broadcast %19 : vector<1x128xf32> to vector<16x128xf32>
    %21 = arith.addf %18, %20 : vector<16x128xf32>
    %22 = vector.shape_cast %21 : vector<16x128xf32> to vector<2x8x128xf32>
    %23 = vector.shape_cast %16 : vector<2x8xf32> to vector<2x8x1xf32>
    %24 = vector.broadcast %23 : vector<2x8x1xf32> to vector<2x8x128xf32>
    %25 = arith.mulf %24, %22 : vector<2x8x128xf32>
    %cst_10 = arith.constant dense<0.000000e+00> : vector<2x128xf32>
    %26 = vector.multi_reduction <add>, %25, %cst_10 [1] : vector<2x8x128xf32> to vector<2x128xf32>
    %c0_11 = arith.constant 0 : index
    %c0_12 = arith.constant 0 : index
    %27 = vector.load %arg5[%c0_11, %c0_12] : memref<128x128xf32, #tpu.memory_space<vmem>>, vector<128x128xf32>
    %cst_13 = arith.constant dense<0.000000e+00> : vector<2x128xf32>
    %28 = tpu.matmul %26, %27, %cst_13 {dimension_numbers = #tpu.dot_dimension_numbers<[1], [0], [0], [1], [0, 0, 1, 1], [], []>} : vector<2x128xf32>, vector<128x128xf32>, vector<2x128xf32> -> vector<2x128xf32>
    %c0_14 = arith.constant 0 : index
    %c0_15 = arith.constant 0 : index
    %29 = vector.load %arg6[%c0_14, %c0_15] : memref<1x128xf32, #tpu.memory_space<vmem>>, vector<1x128xf32>
    %30 = vector.broadcast %29 : vector<1x128xf32> to vector<2x128xf32>
    %31 = arith.addf %28, %30 : vector<2x128xf32>
    %cst_16 = arith.constant dense<0.000000e+00> : vector<2xf32>
    %32 = vector.multi_reduction <add>, %31, %cst_16 [1] : vector<2x128xf32> to vector<2xf32>
    %33 = vector.shape_cast %32 : vector<2xf32> to vector<2x1xf32>
    %cst_17 = arith.constant 3.125000e-02 : f32
    %34 = vector.broadcast %cst_17 : f32 to vector<2x1xf32>
    %35 = arith.mulf %33, %34 : vector<2x1xf32>
    %36 = arith.mulf %31, %31 : vector<2x128xf32>
    %cst_18 = arith.constant dense<0.000000e+00> : vector<2xf32>
    %37 = vector.multi_reduction <add>, %36, %cst_18 [1] : vector<2x128xf32> to vector<2xf32>
    %38 = vector.shape_cast %37 : vector<2xf32> to vector<2x1xf32>
    %cst_19 = arith.constant 3.125000e-02 : f32
    %39 = vector.broadcast %cst_19 : f32 to vector<2x1xf32>
    %40 = arith.mulf %38, %39 : vector<2x1xf32>
    %41 = arith.mulf %35, %35 : vector<2x1xf32>
    %42 = arith.subf %40, %41 : vector<2x1xf32>
    %43 = vector.broadcast %35 : vector<2x1xf32> to vector<2x128xf32>
    %44 = arith.subf %31, %43 : vector<2x128xf32>
    %cst_20 = arith.constant 9.99999974E-6 : f32
    %45 = vector.broadcast %cst_20 : f32 to vector<2x1xf32>
    %46 = arith.addf %42, %45 : vector<2x1xf32>
    %47 = math.rsqrt %46 : vector<2x1xf32>
    %48 = vector.broadcast %47 : vector<2x1xf32> to vector<2x128xf32>
    %49 = arith.mulf %44, %48 : vector<2x128xf32>
    %c0_21 = arith.constant 0 : index
    %c0_22 = arith.constant 0 : index
    %50 = vector.load %arg7[%c0_21, %c0_22] : memref<1x128xf32, #tpu.memory_space<vmem>>, vector<1x128xf32>
    %51 = vector.broadcast %50 : vector<1x128xf32> to vector<2x128xf32>
    %52 = arith.mulf %49, %51 : vector<2x128xf32>
    %c0_23 = arith.constant 0 : index
    %c0_24 = arith.constant 0 : index
    %53 = vector.load %arg8[%c0_23, %c0_24] : memref<1x128xf32, #tpu.memory_space<vmem>>, vector<1x128xf32>
    %54 = vector.broadcast %53 : vector<1x128xf32> to vector<2x128xf32>
    %55 = arith.addf %52, %54 : vector<2x128xf32>
    %c0_25 = arith.constant 0 : index
    %c0_26 = arith.constant 0 : index
    %56 = vector.load %arg9[%c0_25, %c0_26] : memref<2x128xf32, #tpu.memory_space<vmem>>, vector<2x128xf32>
    tpu.vector_store %arg9[%c0_25, %c0_26], %55 {strides = array<i32>} : memref<2x128xf32, #tpu.memory_space<vmem>>, vector<2x128xf32>,
    return
  }
  func.func @transform_0(%arg0: i32) -> (i32, i32) {
    %c0_i32 = arith.constant 0 : i32
    %c0_i32_0 = arith.constant 0 : i32
    return %arg0, %c0_i32 : i32, i32
  }
  func.func @transform_1(%arg0: i32) -> (i32, i32) {
    %c0_i32 = arith.constant 0 : i32
    %c0_i32_0 = arith.constant 0 : i32
    %c0_i32_1 = arith.constant 0 : i32
    return %c0_i32, %c0_i32_0 : i32, i32
  }
  func.func @transform_2(%arg0: i32) -> (i32, i32) {
    %c0_i32 = arith.constant 0 : i32
    %c0_i32_0 = arith.constant 0 : i32
    %c0_i32_1 = arith.constant 0 : i32
    return %c0_i32, %c0_i32_0 : i32, i32
  }
  func.func @transform_3(%arg0: i32) -> (i32, i32) {
    %c0_i32 = arith.constant 0 : i32
    %c0_i32_0 = arith.constant 0 : i32
    %c0_i32_1 = arith.constant 0 : i32
    return %c0_i32, %c0_i32_0 : i32, i32
  }
  func.func @transform_4(%arg0: i32) -> (i32, i32) {
    %c0_i32 = arith.constant 0 : i32
    %c0_i32_0 = arith.constant 0 : i32
    %c0_i32_1 = arith.constant 0 : i32
    return %c0_i32, %c0_i32_0 : i32, i32
  }
  func.func @transform_5(%arg0: i32) -> (i32, i32) {
    %c0_i32 = arith.constant 0 : i32
    %c0_i32_0 = arith.constant 0 : i32
    %c0_i32_1 = arith.constant 0 : i32
    return %c0_i32, %c0_i32_0 : i32, i32
  }
  func.func @transform_6(%arg0: i32) -> (i32, i32) {
    %c0_i32 = arith.constant 0 : i32
    %c0_i32_0 = arith.constant 0 : i32
    %c0_i32_1 = arith.constant 0 : i32
    return %c0_i32, %c0_i32_0 : i32, i32
  }
  func.func @transform_7(%arg0: i32) -> (i32, i32) {
    %c0_i32 = arith.constant 0 : i32
    %c0_i32_0 = arith.constant 0 : i32
    %c0_i32_1 = arith.constant 0 : i32
    return %c0_i32, %c0_i32_0 : i32, i32
  }
  func.func @transform_8(%arg0: i32) -> (i32, i32) {
    %c0_i32 = arith.constant 0 : i32
    %c0_i32_0 = arith.constant 0 : i32
    return %arg0, %c0_i32 : i32, i32
  }
}

</mosaic_0001>

<llo_original>
// kernel: tpu_custom_call.1
$region0: #{tpu_custom_call.1}
  #allocation0 [shape = 'u32[]', space=smem, size = 0x4, offset = 0x4, fixed_abs, tag = 'smem constant byte address 0x4 - core index']
  #allocation1 [shape = 'u32[144,128]{1,0:T(1,128)}', space=vmem, size = 0x12000, scoped, tag = 'internal scratch']
  %s0 = inlined_call_operand.hbm [shape: f32[16,128], index: 0, kind: input, shape index: {}]
  %s1 = inlined_call_operand.vmem [shape: f32[1,128], index: 1, kind: input, shape index: {}]
  %s2 = inlined_call_operand.hbm [shape: f32[128,128], index: 2, kind: input, shape index: {}]
  %s3 = inlined_call_operand.vmem [shape: f32[1,128], index: 3, kind: input, shape index: {}]
  %s4 = inlined_call_operand.hbm [shape: f32[128,128], index: 4, kind: input, shape index: {}]
  %s5 = inlined_call_operand.vmem [shape: f32[1,128], index: 5, kind: input, shape index: {}]
  %s6 = inlined_call_operand.vmem [shape: f32[1,128], index: 6, kind: input, shape index: {}]
  %s7 = inlined_call_operand.vmem [shape: f32[1,128], index: 7, kind: input, shape index: {}]
  %s8 = inlined_call_operand.hbm [shape: f32[2,128], index: 8, kind: output, shape index: {}]
  %s9 = sld [smem:[#allocation0]]
  $region54: #{tpu_custom_call.1} parent=0
    _
  %s11 = ssub.s32 1, %s9
  %s12 = scalar_select 0, %s11, %s9
  $region1: #{tpu_custom_call.1} parent=0
    #allocation2 [shape = 'u8[8192]{0}', space=vmem, size = 0x2000, scoped, tag = 'input window, operand 0, single buffered']
    #allocation3 [shape = 's32[1]{0}', space=sflag, size = 0x4, scoped, tag = 'scoped memory for tpu_custom_call.1']
    #allocation4 [shape = 's32[1]{0}', space=sflag, size = 0x4, scoped, tag = 'scoped memory for tpu_custom_call.1']
    #allocation5 [shape = 'u8[65536]{0}', space=vmem, size = 0x10000, scoped, tag = 'input window, operand 2, single buffered']
    #allocation6 [shape = 's32[1]{0}', space=sflag, size = 0x4, scoped, tag = 'scoped memory for tpu_custom_call.1']
    #allocation7 [shape = 'u8[65536]{0}', space=vmem, size = 0x10000, scoped, tag = 'input window, operand 4, single buffered']
    #allocation8 [shape = 'u8[1024]{0}', space=vmem, size = 0x400, scoped, tag = 'output window, operand 0, single buffered']
    %13 = vsyncpa [#allocation3], 0
    %14 = vsyncpa [#allocation6], 0
    %15 = vsyncpa [#allocation4], 0
    // Predicated region
    $region2: #{tpu_custom_call.1} parent=1 // pred_check
      _
    $region3: #{tpu_custom_call.1} parent=1 // pred_check_branch
      %17 = sbr.rel (0) target = $region5
    $region4: #{tpu_custom_call.1} parent=1 // pred_region
      %s19 = ssub.s32 256, 256
      %20 = vsyncadd [#allocation3], %s19
      %s21 = sshll.u32 [#allocation2], 4
      %s22 = int_to_ptr.vmem [resolvable:$true] %s21
      %27 = dma.hbm_to_vmem [thread:$0]  %s0, 256, %s22, [#allocation3], 128, 128, 8
    $region5: #{tpu_custom_call.1} parent=1 // pred_fallthru
      _
    // Predicated region
    $region6: #{tpu_custom_call.1} parent=1 // pred_check
      _
    $region7: #{tpu_custom_call.1} parent=1 // pred_check_branch
      %29 = sbr.rel (0) target = $region9
    $region8: #{tpu_custom_call.1} parent=1 // pred_region
      _
    $region9: #{tpu_custom_call.1} parent=1 // pred_fallthru
      _
    // Predicated region
    $region10: #{tpu_custom_call.1} parent=1 // pred_check
      _
    $region11: #{tpu_custom_call.1} parent=1 // pred_check_branch
      %31 = sbr.rel (0) target = $region13
    $region12: #{tpu_custom_call.1} parent=1 // pred_region
      %s33 = ssub.s32 2048, 2048
      %34 = vsyncadd [#allocation6], %s33
      %s35 = sshll.u32 [#allocation5], 4
      %s36 = int_to_ptr.vmem [resolvable:$true] %s35
      %41 = dma.hbm_to_vmem [thread:$0]  %s2, 2048, %s36, [#allocation6], 128, 128, 8
    $region13: #{tpu_custom_call.1} parent=1 // pred_fallthru
      _
    // Predicated region
    $region14: #{tpu_custom_call.1} parent=1 // pred_check
      _
    $region15: #{tpu_custom_call.1} parent=1 // pred_check_branch
      %43 = sbr.rel (0) target = $region17
    $region16: #{tpu_custom_call.1} parent=1 // pred_region
      _
    $region17: #{tpu_custom_call.1} parent=1 // pred_fallthru
      _
    // Predicated region
    $region18: #{tpu_custom_call.1} parent=1 // pred_check
      _
    $region19: #{tpu_custom_call.1} parent=1 // pred_check_branch
      %45 = sbr.rel (0) target = $region21
    $region20: #{tpu_custom_call.1} parent=1 // pred_region
      %s47 = ssub.s32 2048, 2048
      %48 = vsyncadd [#allocation6], %s47
      %s49 = sshll.u32 [#allocation7], 4
      %s50 = int_to_ptr.vmem [resolvable:$true] %s49
      %55 = dma.hbm_to_vmem [thread:$0]  %s4, 2048, %s50, [#allocation6], 128, 128, 8
    $region21: #{tpu_custom_call.1} parent=1 // pred_fallthru
      _
    // Predicated region
    $region22: #{tpu_custom_call.1} parent=1 // pred_check
      _
    $region23: #{tpu_custom_call.1} parent=1 // pred_check_branch
      %57 = sbr.rel (0) target = $region25
    $region24: #{tpu_custom_call.1} parent=1 // pred_region
      _
    $region25: #{tpu_custom_call.1} parent=1 // pred_fallthru
      _
    // Predicated region
    $region26: #{tpu_custom_call.1} parent=1 // pred_check
      _
    $region27: #{tpu_custom_call.1} parent=1 // pred_check_branch
      %59 = sbr.rel (0) target = $region29
    $region28: #{tpu_custom_call.1} parent=1 // pred_region
      _
    $region29: #{tpu_custom_call.1} parent=1 // pred_fallthru
      _
    // Predicated region
    $region30: #{tpu_custom_call.1} parent=1 // pred_check
      _
    $region31: #{tpu_custom_call.1} parent=1 // pred_check_branch
      %61 = sbr.rel (0) target = $region33
    $region32: #{tpu_custom_call.1} parent=1 // pred_region
      _
    $region33: #{tpu_custom_call.1} parent=1 // pred_fallthru
      _
    // Predicated region
    $region34: #{tpu_custom_call.1} parent=1 // pred_check
      _
    $region35: #{tpu_custom_call.1} parent=1 // pred_check_branch
      %63 = sbr.rel (0) target = $region37
    $region36: #{tpu_custom_call.1} parent=1 // pred_region
      %64 = dma.done [#allocation3], 256
    $region37: #{tpu_custom_call.1} parent=1 // pred_fallthru
      _
    // Predicated region
    $region38: #{tpu_custom_call.1} parent=1 // pred_check
      _
    $region39: #{tpu_custom_call.1} parent=1 // pred_check_branch
      %66 = sbr.rel (0) target = $region41
    $region40: #{tpu_custom_call.1} parent=1 // pred_region
      %67 = dma.done [#allocation6], 2048
    $region41: #{tpu_custom_call.1} parent=1 // pred_fallthru
      _
    // Predicated region
    $region42: #{tpu_custom_call.1} parent=1 // pred_check
      _
    $region43: #{tpu_custom_call.1} parent=1 // pred_check_branch
      %69 = sbr.rel (0) target = $region45
    $region44: #{tpu_custom_call.1} parent=1 // pred_region
      %70 = dma.done [#allocation6], 2048
    $region45: #{tpu_custom_call.1} parent=1 // pred_fallthru
      _
    %v71 = vld [vmem:[#allocation2] sm:$0xff]
    %v72 = vld [vmem:[#allocation2 + $0x8] sm:$0xff]
    %v73 = vld [vmem:[%s1] sm:$0x1]
    %v75 = vlaneseq
    %v76 = vshrl.u32 %v75, 7
    %v77 = vsub.s32 0, %v76
    %v78 = vrot.slane %v73, %v77
    %v80 = vmul.f32 %v71, %v78
    %v81 = vmul.f32 %v72, %v78
    %82 = vadd.xlane.f32.xlu0 %v80
    %v83 = vpop.xlane.xlu0 %82
    %84 = vadd.xlane.f32.xlu0 %v81
    %v85 = vpop.xlane.xlu0 %84
    %v88 = vlaneseq
    %v89 = vand.u32 %v88, 127
    %v90 = vlaneseq
    %v91 = vshrl.u32 %v90, 7
    %v92 = vsub.s32 %v89, %v91
    %v93 = vrot.slane %v83, %v92
    %v94 = vlaneseq
    %v95 = vshrl.u32 %v94, 7
    %v96 = vsub.s32 %v89, %v95
    %v97 = vrot.slane %v85, %v96
    %vm98 = vcmask 1041409
    %v99 = vsel %vm98, %v97, %v93
    %vm101 = vcmask 58368
    %v102 = vsel %vm101, %v99, -inf
    %103 = vmax.xlane.f32.xlu0 %v102
    %v104 = vpop.xlane.xlu0 %103
    %v106 = vlaneseq
    %v107 = vshrl.u32 %v106, 7
    %v108 = vsub.s32 0, %v107
    %v109 = vrot.slane %v104, %v108
    %v110 = vlaneseq
    %v111 = vshrl.u32 %v110, 7
    %v112 = vsub.s32 1, %v111
    %v113 = vrot.slane %v104, %v112
    %v116 = vsub.f32 %v83, %v109
    %v117 = vsub.f32 %v85, %v113
    %v118 = vmul.f32 %v116, 1.442695
    %v119 = vpow.pop %v118
    %v120 = vmul.f32 %v117, 1.442695
    %v121 = vpow.pop %v120
    %124 = vset.pattern.permute.xlu0 0
    %125 = vperm.xlu0 %124, %v119
    %v126 = vpop.permute.xlu0 %125
    %127 = vset.pattern.permute.xlu0 0
    %128 = vperm.xlu0 %127, %v121
    %v129 = vpop.permute.xlu0 %128
    %v130 = vlaneseq
    %v131 = vshrl.u32 %v130, 7
    %v132 = vsub.s32 %v89, %v131
    %v133 = vrot.slane %v126, %v132
    %v134 = vlaneseq
    %v135 = vshrl.u32 %v134, 7
    %v136 = vsub.s32 %v89, %v135
    %v137 = vrot.slane %v129, %v136
    %v138 = vsel %vm98, %v137, %v133
    %v140 = vsel %vm101, %v138, 0.0
    %141 = vadd.xlane.f32.xlu0 %v140
    %v142 = vpop.xlane.xlu0 %141
    %v143 = vrcp.pop %v142
    %v145 = vlaneseq
    %v146 = vshrl.u32 %v145, 7
    %v147 = vsub.s32 0, %v146
    %v148 = vrot.slane %v143, %v147
    %v149 = vlaneseq
    %v150 = vshrl.u32 %v149, 7
    %v151 = vsub.s32 1, %v150
    %v152 = vrot.slane %v143, %v151
    %v155 = vmul.f32 %v119, %v148
    %v156 = vmul.f32 %v121, %v152
    %v157 = vld [vmem:[#allocation5] sm:$0xff]
    %v158 = vld [vmem:[#allocation5 + $0x8] sm:$0xff]
    %v159 = vld [vmem:[#allocation5 + $0x10] sm:$0xff]
    %v160 = vld [vmem:[#allocation5 + $0x18] sm:$0xff]
    %v161 = vld [vmem:[#allocation5 + $0x20] sm:$0xff]
    %v162 = vld [vmem:[#allocation5 + $0x28] sm:$0xff]
    %v163 = vld [vmem:[#allocation5 + $0x30] sm:$0xff]
    %v164 = vld [vmem:[#allocation5 + $0x38] sm:$0xff]
    %v165 = vld [vmem:[#allocation5 + $0x40] sm:$0xff]
    %v166 = vld [vmem:[#allocation5 + $0x48] sm:$0xff]
    %v167 = vld [vmem:[#allocation5 + $0x50] sm:$0xff]
    %v168 = vld [vmem:[#allocation5 + $0x58] sm:$0xff]
    %v169 = vld [vmem:[#allocation5 + $0x60] sm:$0xff]
    %v170 = vld [vmem:[#allocation5 + $0x68] sm:$0xff]
    %v171 = vld [vmem:[#allocation5 + $0x70] sm:$0xff]
    %v172 = vld [vmem:[#allocation5 + $0x78] sm:$0xff]
    %v173 = vld [vmem:[%s3] sm:$0x1]
    %v175 = vlaneseq
    %v176 = vshrl.u32 %v175, 7
    %v177 = vsub.s32 0, %v176
    %v178 = vrot.slane %v173, %v177
    %180 = vmatprep.subr.mxu0 0.0
    %181 = vmatpush1.msra.mxu0 %v172
    %182 = vmatprep.subr.mxu0 0.0
    %183 = vmatpush1.msra.mxu0 %v171
    %184 = vmatprep.subr.mxu0 0.0
    %185 = vmatpush1.msra.mxu0 %v170
    %186 = vmatprep.subr.mxu0 0.0
    %187 = vmatpush1.msra.mxu0 %v169
    %188 = vmatprep.subr.mxu0 0.0
    %189 = vmatpush1.msra.mxu0 %v168
    %190 = vmatprep.subr.mxu0 0.0
    %191 = vmatpush1.msra.mxu0 %v167
    %192 = vmatprep.subr.mxu0 0.0
    %193 = vmatpush1.msra.mxu0 %v166
    %194 = vmatprep.subr.mxu0 0.0
    %195 = vmatpush1.msra.mxu0 %v165
    %196 = vmatprep.subr.mxu0 0.0
    %197 = vmatpush1.msra.mxu0 %v164
    %198 = vmatprep.subr.mxu0 0.0
    %199 = vmatpush1.msra.mxu0 %v163
    %200 = vmatprep.subr.mxu0 0.0
    %201 = vmatpush1.msra.mxu0 %v162
    %202 = vmatprep.subr.mxu0 0.0
    %203 = vmatpush1.msra.mxu0 %v161
    %204 = vmatprep.subr.mxu0 0.0
    %205 = vmatpush1.msra.mxu0 %v160
    %206 = vmatprep.subr.mxu0 0.0
    %207 = vmatpush1.msra.mxu0 %v159
    %208 = vmatprep.subr.mxu0 0.0
    %209 = vmatpush1.msra.mxu0 %v158
    %210 = vmatprep.subr.mxu0 0.0
    %211 = vmatpush1.msra.mxu0 %v157
    %212 = vmatprep.subr.mxu0 0.0
    %213 = vmatpush2.msra.mxu0 0.0
    %214 = vmatprep.subr.mxu0 0.0
    %215 = vmatpush2.msra.mxu0 0.0
    %216 = vmatprep.subr.mxu0 0.0
    %217 = vmatpush2.msra.mxu0 0.0
    %218 = vmatprep.subr.mxu0 0.0
    %219 = vmatpush2.msra.mxu0 0.0
    %220 = vmatprep.subr.mxu0 0.0
    %221 = vmatpush2.msra.mxu0 0.0
    %222 = vmatprep.subr.mxu0 0.0
    %223 = vmatpush2.msra.mxu0 0.0
    %224 = vmatprep.subr.mxu0 0.0
    %225 = vmatpush2.msra.mxu0 0.0
    %226 = vmatprep.subr.mxu0 0.0
    %227 = vmatpush2.msra.mxu0 0.0
    %228 = vmatprep.subr.mxu0 0.0
    %229 = vmatpush2.msra.mxu0 0.0
    %230 = vmatprep.subr.mxu0 0.0
    %231 = vmatpush2.msra.mxu0 0.0
    %232 = vmatprep.subr.mxu0 0.0
    %233 = vmatpush2.msra.mxu0 0.0
    %234 = vmatprep.subr.mxu0 0.0
    %235 = vmatpush2.msra.mxu0 0.0
    %236 = vmatprep.subr.mxu0 0.0
    %237 = vmatpush2.msra.mxu0 0.0
    %238 = vmatprep.subr.mxu0 0.0
    %239 = vmatpush2.msra.mxu0 0.0
    %240 = vmatprep.subr.mxu0 0.0
    %241 = vmatpush2.msra.mxu0 0.0
    %242 = vmatprep.subr.mxu0 0.0
    %243 = vmatpush2.msra.mxu0 0.0
    %244 = vmatprep.mubr.f32.mxu0 0.0
    %245 = vmatmul.mubr.f32.gmra.mxu0 %v71
    %v246 = vpop.f32.mrf.mxu0
    %v247 = vadd.f32 %v178, %v246
    %v248 = vpop.f32.mrf.mxu0
    %249 = vmatprep.mubr.f32.mxu0 0.0
    %250 = vmatmul.mubr.f32.gmra.mxu0 %v72
    %v251 = vpop.f32.mrf.mxu0
    %v252 = vadd.f32 %v178, %v251
    %v253 = vpop.f32.mrf.mxu0
    %254 = vdwg.mxu0
    %256 = vset.pattern.permute.xlu0 0
    %257 = vperm.xlu0 %256, %v155
    %v258 = vpop.permute.xlu0 %257
    %261 = vset.pattern.permute.xlu0 0
    %262 = vperm.xlu0 %261, %v156
    %v263 = vpop.permute.xlu0 %262
    %v265 = vmul.f32 %v258, %v247
    %v266 = vmul.f32 %v263, %v252
    %v267 = vrot.slane %v265, 4
    %v268 = vadd.f32 %v265, %v267
    %v269 = vrot.slane %v268, 2
    %v270 = vadd.f32 %v268, %v269
    %v271 = vrot.slane %v270, 1
    %v272 = vadd.f32 %v270, %v271
    %v273 = vrot.slane %v266, 4
    %v274 = vadd.f32 %v266, %v273
    %v275 = vrot.slane %v274, 2
    %v276 = vadd.f32 %v274, %v275
    %v277 = vrot.slane %v276, 1
    %v278 = vadd.f32 %v276, %v277
    %v279 = vld [vmem:[#allocation7] sm:$0xff]
    %v280 = vld [vmem:[#allocation7 + $0x8] sm:$0xff]
    %v281 = vld [vmem:[#allocation7 + $0x10] sm:$0xff]
    %v282 = vld [vmem:[#allocation7 + $0x18] sm:$0xff]
    %v283 = vld [vmem:[#allocation7 + $0x20] sm:$0xff]
    %v284 = vld [vmem:[#allocation7 + $0x28] sm:$0xff]
    %v285 = vld [vmem:[#allocation7 + $0x30] sm:$0xff]
    %v286 = vld [vmem:[#allocation7 + $0x38] sm:$0xff]
    %v287 = vld [vmem:[#allocation7 + $0x40] sm:$0xff]
    %v288 = vld [vmem:[#allocation7 + $0x48] sm:$0xff]
    %v289 = vld [vmem:[#allocation7 + $0x50] sm:$0xff]
    %v290 = vld [vmem:[#allocation7 + $0x58] sm:$0xff]
    %v291 = vld [vmem:[#allocation7 + $0x60] sm:$0xff]
    %v292 = vld [vmem:[#allocation7 + $0x68] sm:$0xff]
    %v293 = vld [vmem:[#allocation7 + $0x70] sm:$0xff]
    %v294 = vld [vmem:[#allocation7 + $0x78] sm:$0xff]
    %v295 = vld [vmem:[%s5] sm:$0x1]
    %v297 = vlaneseq
    %v298 = vshrl.u32 %v297, 7
    %v299 = vsub.s32 0, %v298
    %v300 = vrot.slane %v295, %v299
    %v304 = vsel %vm98, %v278, %v272
    %306 = vmatprep.subr.mxu0 0.0
    %307 = vmatpush1.msra.mxu0 %v294
    %308 = vmatprep.subr.mxu0 0.0
    %309 = vmatpush1.msra.mxu0 %v293
    %310 = vmatprep.subr.mxu0 0.0
    %311 = vmatpush1.msra.mxu0 %v292
    %312 = vmatprep.subr.mxu0 0.0
    %313 = vmatpush1.msra.mxu0 %v291
    %314 = vmatprep.subr.mxu0 0.0
    %315 = vmatpush1.msra.mxu0 %v290
    %316 = vmatprep.subr.mxu0 0.0
    %317 = vmatpush1.msra.mxu0 %v289
    %318 = vmatprep.subr.mxu0 0.0
    %319 = vmatpush1.msra.mxu0 %v288
    %320 = vmatprep.subr.mxu0 0.0
    %321 = vmatpush1.msra.mxu0 %v287
    %322 = vmatprep.subr.mxu0 0.0
    %323 = vmatpush1.msra.mxu0 %v286
    %324 = vmatprep.subr.mxu0 0.0
    %325 = vmatpush1.msra.mxu0 %v285
    %326 = vmatprep.subr.mxu0 0.0
    %327 = vmatpush1.msra.mxu0 %v284
    %328 = vmatprep.subr.mxu0 0.0
    %329 = vmatpush1.msra.mxu0 %v283
    %330 = vmatprep.subr.mxu0 0.0
    %331 = vmatpush1.msra.mxu0 %v282
    %332 = vmatprep.subr.mxu0 0.0
    %333 = vmatpush1.msra.mxu0 %v281
    %334 = vmatprep.subr.mxu0 0.0
    %335 = vmatpush1.msra.mxu0 %v280
    %336 = vmatprep.subr.mxu0 0.0
    %337 = vmatpush1.msra.mxu0 %v279
    %338 = vmatprep.subr.mxu0 0.0
    %339 = vmatpush2.msra.mxu0 0.0
    %340 = vmatprep.subr.mxu0 0.0
    %341 = vmatpush2.msra.mxu0 0.0
    %342 = vmatprep.subr.mxu0 0.0
    %343 = vmatpush2.msra.mxu0 0.0
    %344 = vmatprep.subr.mxu0 0.0
    %345 = vmatpush2.msra.mxu0 0.0
    %346 = vmatprep.subr.mxu0 0.0
    %347 = vmatpush2.msra.mxu0 0.0
    %348 = vmatprep.subr.mxu0 0.0
    %349 = vmatpush2.msra.mxu0 0.0
    %350 = vmatprep.subr.mxu0 0.0
    %351 = vmatpush2.msra.mxu0 0.0
    %352 = vmatprep.subr.mxu0 0.0
    %353 = vmatpush2.msra.mxu0 0.0
    %354 = vmatprep.subr.mxu0 0.0
    %355 = vmatpush2.msra.mxu0 0.0
    %356 = vmatprep.subr.mxu0 0.0
    %357 = vmatpush2.msra.mxu0 0.0
    %358 = vmatprep.subr.mxu0 0.0
    %359 = vmatpush2.msra.mxu0 0.0
    %360 = vmatprep.subr.mxu0 0.0
    %361 = vmatpush2.msra.mxu0 0.0
    %362 = vmatprep.subr.mxu0 0.0
    %363 = vmatpush2.msra.mxu0 0.0
    %364 = vmatprep.subr.mxu0 0.0
    %365 = vmatpush2.msra.mxu0 0.0
    %366 = vmatprep.subr.mxu0 0.0
    %367 = vmatpush2.msra.mxu0 0.0
    %368 = vmatprep.subr.mxu0 0.0
    %369 = vmatpush2.msra.mxu0 0.0
    %370 = vmatprep.mubr.f32.mxu0 0.0
    %371 = vmatmul.mubr.f32.gmra.mxu0 %v304
    %v372 = vpop.f32.mrf.mxu0
    %v373 = vadd.f32 %v300, %v372
    %v374 = vpop.f32.mrf.mxu0
    %375 = vdwg.mxu0
    %vm376 = vcmask 1041408
    %v377 = vsel %vm376, %v373, 0.0
    %378 = vadd.xlane.f32.xlu0 %v377
    %v379 = vpop.xlane.xlu0 %378
    %v380 = vmul.f32 %v379, 0.03125
    %v381 = vmul.f32 %v373, %v373
    %v382 = vsel %vm376, %v381, 0.0
    %383 = vadd.xlane.f32.xlu0 %v382
    %v384 = vpop.xlane.xlu0 %383
    %v385 = vmul.f32 %v384, 0.03125
    %v386 = vmul.f32 %v380, %v380
    %v387 = vsub.f32 %v385, %v386
    %v388 = vsub.f32 %v373, %v380
    %v389 = vadd.f32 %v387, 1e-05
    %v390 = vrsqrt.pop %v389
    %v391 = vmul.f32 %v388, %v390
    %v392 = vld [vmem:[%s6] sm:$0x1]
    %v394 = vlaneseq
    %v395 = vshrl.u32 %v394, 7
    %v396 = vsub.s32 0, %v395
    %v397 = vrot.slane %v392, %v396
    %v399 = vmul.f32 %v391, %v397
    %v400 = vld [vmem:[%s7] sm:$0x1]
    %v402 = vlaneseq
    %v403 = vshrl.u32 %v402, 7
    %v404 = vsub.s32 0, %v403
    %v405 = vrot.slane %v400, %v404
    %v407 = vadd.f32 %v399, %v405
    %408 = vst [vmem:[#allocation8] sm:$0x3] %v407
    // Predicated region
    $region46: #{tpu_custom_call.1} parent=1 // pred_check
      _
    $region47: #{tpu_custom_call.1} parent=1 // pred_check_branch
      %410 = sbr.rel (0) target = $region49
    $region48: #{tpu_custom_call.1} parent=1 // pred_region
      %s412 = ssub.s32 32, 32
      %413 = vsyncadd [#allocation4], %s412
      %s415 = sshll.u32 [#allocation8], 4
      %s416 = int_to_ptr.vmem [resolvable:$true] %s415
      %418 = dma.vmem_to_hbm [thread:$0]  %s416, 32, %s8, [#allocation4]
    $region49: #{tpu_custom_call.1} parent=1 // pred_fallthru
      _
    // Predicated region
    $region50: #{tpu_custom_call.1} parent=1 // pred_check
      _
    $region51: #{tpu_custom_call.1} parent=1 // pred_check_branch
      %420 = sbr.rel (0) target = $region53
    $region52: #{tpu_custom_call.1} parent=1 // pred_region
      %421 = dma.done [#allocation4], 32
    $region53: #{tpu_custom_call.1} parent=1 // pred_fallthru
      _
    %422 = vsyncpa [#allocation3], 1
    %423 = vsyncpa [#allocation6], 1
    %424 = vsyncpa [#allocation4], 1

// kernel: tpu_custom_call.1
$region0: #{tpu_custom_call.1}
  #allocation0 [shape = 'u32[]', space=smem, size = 0x4, offset = 0x4, fixed_abs, tag = 'smem constant byte address 0x4 - core index']
  #allocation1 [shape = 'u32[144,128]{1,0:T(1,128)}', space=vmem, size = 0x12000, scoped, tag = 'internal scratch']
  %s0 = inlined_call_operand.hbm [shape: f32[16,128], index: 0, kind: input, shape index: {}]
  %s1 = inlined_call_operand.vmem [shape: f32[1,128], index: 1, kind: input, shape index: {}]
  %s2 = inlined_call_operand.hbm [shape: f32[128,128], index: 2, kind: input, shape index: {}]
  %s3 = inlined_call_operand.vmem [shape: f32[1,128], index: 3, kind: input, shape index: {}]
  %s4 = inlined_call_operand.hbm [shape: f32[128,128], index: 4, kind: input, shape index: {}]
  %s5 = inlined_call_operand.vmem [shape: f32[1,128], index: 5, kind: input, shape index: {}]
  %s6 = inlined_call_operand.vmem [shape: f32[1,128], index: 6, kind: input, shape index: {}]
  %s7 = inlined_call_operand.vmem [shape: f32[1,128], index: 7, kind: input, shape index: {}]
  %s8 = inlined_call_operand.hbm [shape: f32[2,128], index: 8, kind: output, shape index: {}]
  %s9 = sld [smem:[#allocation0]]
  $region54: #{tpu_custom_call.1} parent=0
    _
  %s11 = ssub.s32 1, %s9
  %s12 = scalar_select 0, %s11, %s9
  $region1: #{tpu_custom_call.1} parent=0
    #allocation2 [shape = 'u8[8192]{0}', space=vmem, size = 0x2000, scoped, tag = 'input window, operand 0, single buffered']
    #allocation3 [shape = 's32[1]{0}', space=sflag, size = 0x4, scoped, tag = 'scoped memory for tpu_custom_call.1']
    #allocation4 [shape = 's32[1]{0}', space=sflag, size = 0x4, scoped, tag = 'scoped memory for tpu_custom_call.1']
    #allocation5 [shape = 'u8[65536]{0}', space=vmem, size = 0x10000, scoped, tag = 'input window, operand 2, single buffered']
    #allocation6 [shape = 's32[1]{0}', space=sflag, size = 0x4, scoped, tag = 'scoped memory for tpu_custom_call.1']
    #allocation7 [shape = 'u8[65536]{0}', space=vmem, size = 0x10000, scoped, tag = 'input window, operand 4, single buffered']
    #allocation8 [shape = 'u8[1024]{0}', space=vmem, size = 0x400, scoped, tag = 'output window, operand 0, single buffered']
    %13 = vsyncpa [#allocation3], 0
    %14 = vsyncpa [#allocation6], 0
    %15 = vsyncpa [#allocation4], 0
    // Predicated region
    $region2: #{tpu_custom_call.1} parent=1 // pred_check
      _
    $region3: #{tpu_custom_call.1} parent=1 // pred_check_branch
      %17 = sbr.rel (0) target = $region5
    $region4: #{tpu_custom_call.1} parent=1 // pred_region
      %s19 = ssub.s32 256, 256
      %20 = vsyncadd [#allocation3], %s19
      %s21 = sshll.u32 [#allocation2], 4
      %s22 = int_to_ptr.vmem [resolvable:$true] %s21
      %27 = dma.hbm_to_vmem [thread:$0]  %s0, 256, %s22, [#allocation3], 128, 128, 8
    $region5: #{tpu_custom_call.1} parent=1 // pred_fallthru
      _
    // Predicated region
    $region6: #{tpu_custom_call.1} parent=1 // pred_check
      _
    $region7: #{tpu_custom_call.1} parent=1 // pred_check_branch
      %29 = sbr.rel (0) target = $region9
    $region8: #{tpu_custom_call.1} parent=1 // pred_region
      _
    $region9: #{tpu_custom_call.1} parent=1 // pred_fallthru
      _
    // Predicated region
    $region10: #{tpu_custom_call.1} parent=1 // pred_check
      _
    $region11: #{tpu_custom_call.1} parent=1 // pred_check_branch
      %31 = sbr.rel (0) target = $region13
    $region12: #{tpu_custom_call.1} parent=1 // pred_region
      %s33 = ssub.s32 2048, 2048
      %34 = vsyncadd [#allocation6], %s33
      %s35 = sshll.u32 [#allocation5], 4
      %s36 = int_to_ptr.vmem [resolvable:$true] %s35
      %41 = dma.hbm_to_vmem [thread:$0]  %s2, 2048, %s36, [#allocation6], 128, 128, 8
    $region13: #{tpu_custom_call.1} parent=1 // pred_fallthru
      _
    // Predicated region
    $region14: #{tpu_custom_call.1} parent=1 // pred_check
      _
    $region15: #{tpu_custom_call.1} parent=1 // pred_check_branch
      %43 = sbr.rel (0) target = $region17
    $region16: #{tpu_custom_call.1} parent=1 // pred_region
      _
    $region17: #{tpu_custom_call.1} parent=1 // pred_fallthru
      _
    // Predicated region
    $region18: #{tpu_custom_call.1} parent=1 // pred_check
      _
    $region19: #{tpu_custom_call.1} parent=1 // pred_check_branch
      %45 = sbr.rel (0) target = $region21
    $region20: #{tpu_custom_call.1} parent=1 // pred_region
      %s47 = ssub.s32 2048, 2048
      %48 = vsyncadd [#allocation6], %s47
      %s49 = sshll.u32 [#allocation7], 4
      %s50 = int_to_ptr.vmem [resolvable:$true] %s49
      %55 = dma.hbm_to_vmem [thread:$0]  %s4, 2048, %s50, [#allocation6], 128, 128, 8
    $region21: #{tpu_custom_call.1} parent=1 // pred_fallthru
      _
    // Predicated region
    $region22: #{tpu_custom_call.1} parent=1 // pred_check
      _
    $region23: #{tpu_custom_call.1} parent=1 // pred_check_branch
      %57 = sbr.rel (0) target = $region25
    $region24: #{tpu_custom_call.1} parent=1 // pred_region
      _
    $region25: #{tpu_custom_call.1} parent=1 // pred_fallthru
      _
    // Predicated region
    $region26: #{tpu_custom_call.1} parent=1 // pred_check
      _
    $region27: #{tpu_custom_call.1} parent=1 // pred_check_branch
      %59 = sbr.rel (0) target = $region29
    $region28: #{tpu_custom_call.1} parent=1 // pred_region
      _
    $region29: #{tpu_custom_call.1} parent=1 // pred_fallthru
      _
    // Predicated region
    $region30: #{tpu_custom_call.1} parent=1 // pred_check
      _
    $region31: #{tpu_custom_call.1} parent=1 // pred_check_branch
      %61 = sbr.rel (0) target = $region33
    $region32: #{tpu_custom_call.1} parent=1 // pred_region
      _
    $region33: #{tpu_custom_call.1} parent=1 // pred_fallthru
      _
    // Predicated region
    $region34: #{tpu_custom_call.1} parent=1 // pred_check
      _
    $region35: #{tpu_custom_call.1} parent=1 // pred_check_branch
      %63 = sbr.rel (0) target = $region37
    $region36: #{tpu_custom_call.1} parent=1 // pred_region
      %64 = dma.done [#allocation3], 256
    $region37: #{tpu_custom_call.1} parent=1 // pred_fallthru
      _
    // Predicated region
    $region38: #{tpu_custom_call.1} parent=1 // pred_check
      _
    $region39: #{tpu_custom_call.1} parent=1 // pred_check_branch
      %66 = sbr.rel (0) target = $region41
    $region40: #{tpu_custom_call.1} parent=1 // pred_region
      %67 = dma.done [#allocation6], 2048
    $region41: #{tpu_custom_call.1} parent=1 // pred_fallthru
      _
    // Predicated region
    $region42: #{tpu_custom_call.1} parent=1 // pred_check
      _
    $region43: #{tpu_custom_call.1} parent=1 // pred_check_branch
      %69 = sbr.rel (0) target = $region45
    $region44: #{tpu_custom_call.1} parent=1 // pred_region
      %70 = dma.done [#allocation6], 2048
    $region45: #{tpu_custom_call.1} parent=1 // pred_fallthru
      _
    %v71 = vld [vmem:[#allocation2] sm:$0xff]
    %v72 = vld [vmem:[#allocation2 + $0x8] sm:$0xff]
    %v73 = vld [vmem:[%s1] sm:$0x1]
    %v75 = vlaneseq
    %v76 = vshrl.u32 %v75, 7
    %v77 = vsub.s32 0, %v76
    %v78 = vrot.slane %v73, %v77
    %v80 = vmul.f32 %v71, %v78
    %v81 = vmul.f32 %v72, %v78
    %82 = vadd.xlane.f32.xlu0 %v80
    %v83 = vpop.xlane.xlu0 %82
    %84 = vadd.xlane.f32.xlu0 %v81
    %v85 = vpop.xlane.xlu0 %84
    %v88 = vlaneseq
    %v89 = vand.u32 %v88, 127
    %v90 = vlaneseq
    %v91 = vshrl.u32 %v90, 7
    %v92 = vsub.s32 %v89, %v91
    %v93 = vrot.slane %v83, %v92
    %v94 = vlaneseq
    %v95 = vshrl.u32 %v94, 7
    %v96 = vsub.s32 %v89, %v95
    %v97 = vrot.slane %v85, %v96
    %vm98 = vcmask 1041409
    %v99 = vsel %vm98, %v97, %v93
    %vm101 = vcmask 58368
    %v102 = vsel %vm101, %v99, -inf
    %103 = vmax.xlane.f32.xlu0 %v102
    %v104 = vpop.xlane.xlu0 %103
    %v106 = vlaneseq
    %v107 = vshrl.u32 %v106, 7
    %v108 = vsub.s32 0, %v107
    %v109 = vrot.slane %v104, %v108
    %v110 = vlaneseq
    %v111 = vshrl.u32 %v110, 7
    %v112 = vsub.s32 1, %v111
    %v113 = vrot.slane %v104, %v112
    %v116 = vsub.f32 %v83, %v109
    %v117 = vsub.f32 %v85, %v113
    %v118 = vmul.f32 %v116, 1.442695
    %v119 = vpow.pop %v118
    %v120 = vmul.f32 %v117, 1.442695
    %v121 = vpow.pop %v120
    %124 = vset.pattern.permute.xlu0 0
    %125 = vperm.xlu0 %124, %v119
    %v126 = vpop.permute.xlu0 %125
    %127 = vset.pattern.permute.xlu0 0
    %128 = vperm.xlu0 %127, %v121
    %v129 = vpop.permute.xlu0 %128
    %v130 = vlaneseq
    %v131 = vshrl.u32 %v130, 7
    %v132 = vsub.s32 %v89, %v131
    %v133 = vrot.slane %v126, %v132
    %v134 = vlaneseq
    %v135 = vshrl.u32 %v134, 7
    %v136 = vsub.s32 %v89, %v135
    %v137 = vrot.slane %v129, %v136
    %v138 = vsel %vm98, %v137, %v133
    %v140 = vsel %vm101, %v138, 0.0
    %141 = vadd.xlane.f32.xlu0 %v140
    %v142 = vpop.xlane.xlu0 %141
    %v143 = vrcp.pop %v142
    %v145 = vlaneseq
    %v146 = vshrl.u32 %v145, 7
    %v147 = vsub.s32 0, %v146
    %v148 = vrot.slane %v143, %v147
    %v149 = vlaneseq
    %v150 = vshrl.u32 %v149, 7
    %v151 = vsub.s32 1, %v150
    %v152 = vrot.slane %v143, %v151
    %v155 = vmul.f32 %v119, %v148
    %v156 = vmul.f32 %v121, %v152
    %v157 = vld [vmem:[#allocation5] sm:$0xff]
    %v158 = vld [vmem:[#allocation5 + $0x8] sm:$0xff]
    %v159 = vld [vmem:[#allocation5 + $0x10] sm:$0xff]
    %v160 = vld [vmem:[#allocation5 + $0x18] sm:$0xff]
    %v161 = vld [vmem:[#allocation5 + $0x20] sm:$0xff]
    %v162 = vld [vmem:[#allocation5 + $0x28] sm:$0xff]
    %v163 = vld [vmem:[#allocation5 + $0x30] sm:$0xff]
    %v164 = vld [vmem:[#allocation5 + $0x38] sm:$0xff]
    %v165 = vld [vmem:[#allocation5 + $0x40] sm:$0xff]
    %v166 = vld [vmem:[#allocation5 + $0x48] sm:$0xff]
    %v167 = vld [vmem:[#allocation5 + $0x50] sm:$0xff]
    %v168 = vld [vmem:[#allocation5 + $0x58] sm:$0xff]
    %v169 = vld [vmem:[#allocation5 + $0x60] sm:$0xff]
    %v170 = vld [vmem:[#allocation5 + $0x68] sm:$0xff]
    %v171 = vld [vmem:[#allocation5 + $0x70] sm:$0xff]
    %v172 = vld [vmem:[#allocation5 + $0x78] sm:$0xff]
    %v173 = vld [vmem:[%s3] sm:$0x1]
    %v175 = vlaneseq
    %v176 = vshrl.u32 %v175, 7
    %v177 = vsub.s32 0, %v176
    %v178 = vrot.slane %v173, %v177
    %180 = vmatprep.subr.mxu0 0.0
    %181 = vmatpush1.msra.mxu0 %v172
    %182 = vmatprep.subr.mxu0 0.0
    %183 = vmatpush1.msra.mxu0 %v171
    %184 = vmatprep.subr.mxu0 0.0
    %185 = vmatpush1.msra.mxu0 %v170
    %186 = vmatprep.subr.mxu0 0.0
    %187 = vmatpush1.msra.mxu0 %v169
    %188 = vmatprep.subr.mxu0 0.0
    %189 = vmatpush1.msra.mxu0 %v168
    %190 = vmatprep.subr.mxu0 0.0
    %191 = vmatpush1.msra.mxu0 %v167
    %192 = vmatprep.subr.mxu0 0.0
    %193 = vmatpush1.msra.mxu0 %v166
    %194 = vmatprep.subr.mxu0 0.0
    %195 = vmatpush1.msra.mxu0 %v165
    %196 = vmatprep.subr.mxu0 0.0
    %197 = vmatpush1.msra.mxu0 %v164
    %198 = vmatprep.subr.mxu0 0.0
    %199 = vmatpush1.msra.mxu0 %v163
    %200 = vmatprep.subr.mxu0 0.0
    %201 = vmatpush1.msra.mxu0 %v162
    %202 = vmatprep.subr.mxu0 0.0
    %203 = vmatpush1.msra.mxu0 %v161
    %204 = vmatprep.subr.mxu0 0.0
    %205 = vmatpush1.msra.mxu0 %v160
    %206 = vmatprep.subr.mxu0 0.0
    %207 = vmatpush1.msra.mxu0 %v159
    %208 = vmatprep.subr.mxu0 0.0
    %209 = vmatpush1.msra.mxu0 %v158
    %210 = vmatprep.subr.mxu0 0.0
    %211 = vmatpush1.msra.mxu0 %v157
    %212 = vmatprep.subr.mxu0 0.0
    %213 = vmatpush2.msra.mxu0 0.0
    %214 = vmatprep.subr.mxu0 0.0
    %215 = vmatpush2.msra.mxu0 0.0
    %216 = vmatprep.subr.mxu0 0.0
    %217 = vmatpush2.msra.mxu0 0.0
    %218 = vmatprep.subr.mxu0 0.0
    %219 = vmatpush2.msra.mxu0 0.0
    %220 = vmatprep.subr.mxu0 0.0
    %221 = vmatpush2.msra.mxu0 0.0
    %222 = vmatprep.subr.mxu0 0.0
    %223 = vmatpush2.msra.mxu0 0.0
    %224 = vmatprep.subr.mxu0 0.0
    %225 = vmatpush2.msra.mxu0 0.0
    %226 = vmatprep.subr.mxu0 0.0
    %227 = vmatpush2.msra.mxu0 0.0
    %228 = vmatprep.subr.mxu0 0.0
    %229 = vmatpush2.msra.mxu0 0.0
    %230 = vmatprep.subr.mxu0 0.0
    %231 = vmatpush2.msra.mxu0 0.0
    %232 = vmatprep.subr.mxu0 0.0
    %233 = vmatpush2.msra.mxu0 0.0
    %234 = vmatprep.subr.mxu0 0.0
    %235 = vmatpush2.msra.mxu0 0.0
    %236 = vmatprep.subr.mxu0 0.0
    %237 = vmatpush2.msra.mxu0 0.0
    %238 = vmatprep.subr.mxu0 0.0
    %239 = vmatpush2.msra.mxu0 0.0
    %240 = vmatprep.subr.mxu0 0.0
    %241 = vmatpush2.msra.mxu0 0.0
    %242 = vmatprep.subr.mxu0 0.0
    %243 = vmatpush2.msra.mxu0 0.0
    %244 = vmatprep.mubr.f32.mxu0 0.0
    %245 = vmatmul.mubr.f32.gmra.mxu0 %v71
    %v246 = vpop.f32.mrf.mxu0
    %v247 = vadd.f32 %v178, %v246
    %v248 = vpop.f32.mrf.mxu0
    %249 = vmatprep.mubr.f32.mxu0 0.0
    %250 = vmatmul.mubr.f32.gmra.mxu0 %v72
    %v251 = vpop.f32.mrf.mxu0
    %v252 = vadd.f32 %v178, %v251
    %v253 = vpop.f32.mrf.mxu0
    %254 = vdwg.mxu0
    %256 = vset.pattern.permute.xlu0 0
    %257 = vperm.xlu0 %256, %v155
    %v258 = vpop.permute.xlu0 %257
    %261 = vset.pattern.permute.xlu0 0
    %262 = vperm.xlu0 %261, %v156
    %v263 = vpop.permute.xlu0 %262
    %v265 = vmul.f32 %v258, %v247
    %v266 = vmul.f32 %v263, %v252
    %v267 = vrot.slane %v265, 4
    %v268 = vadd.f32 %v265, %v267
    %v269 = vrot.slane %v268, 2
    %v270 = vadd.f32 %v268, %v269
    %v271 = vrot.slane %v270, 1
    %v272 = vadd.f32 %v270, %v271
    %v273 = vrot.slane %v266, 4
    %v274 = vadd.f32 %v266, %v273
    %v275 = vrot.slane %v274, 2
    %v276 = vadd.f32 %v274, %v275
    %v277 = vrot.slane %v276, 1
    %v278 = vadd.f32 %v276, %v277
    %v279 = vld [vmem:[#allocation7] sm:$0xff]
    %v280 = vld [vmem:[#allocation7 + $0x8] sm:$0xff]
    %v281 = vld [vmem:[#allocation7 + $0x10] sm:$0xff]
    %v282 = vld [vmem:[#allocation7 + $0x18] sm:$0xff]
    %v283 = vld [vmem:[#allocation7 + $0x20] sm:$0xff]
    %v284 = vld [vmem:[#allocation7 + $0x28] sm:$0xff]
    %v285 = vld [vmem:[#allocation7 + $0x30] sm:$0xff]
    %v286 = vld [vmem:[#allocation7 + $0x38] sm:$0xff]
    %v287 = vld [vmem:[#allocation7 + $0x40] sm:$0xff]
    %v288 = vld [vmem:[#allocation7 + $0x48] sm:$0xff]
    %v289 = vld [vmem:[#allocation7 + $0x50] sm:$0xff]
    %v290 = vld [vmem:[#allocation7 + $0x58] sm:$0xff]
    %v291 = vld [vmem:[#allocation7 + $0x60] sm:$0xff]
    %v292 = vld [vmem:[#allocation7 + $0x68] sm:$0xff]
    %v293 = vld [vmem:[#allocation7 + $0x70] sm:$0xff]
    %v294 = vld [vmem:[#allocation7 + $0x78] sm:$0xff]
    %v295 = vld [vmem:[%s5] sm:$0x1]
    %v297 = vlaneseq
    %v298 = vshrl.u32 %v297, 7
    %v299 = vsub.s32 0, %v298
    %v300 = vrot.slane %v295, %v299
    %v304 = vsel %vm98, %v278, %v272
    %306 = vmatprep.subr.mxu0 0.0
    %307 = vmatpush1.msra.mxu0 %v294
    %308 = vmatprep.subr.mxu0 0.0
    %309 = vmatpush1.msra.mxu0 %v293
    %310 = vmatprep.subr.mxu0 0.0
    %311 = vmatpush1.msra.mxu0 %v292
    %312 = vmatprep.subr.mxu0 0.0
    %313 = vmatpush1.msra.mxu0 %v291
    %314 = vmatprep.subr.mxu0 0.0
    %315 = vmatpush1.msra.mxu0 %v290
    %316 = vmatprep.subr.mxu0 0.0
    %317 = vmatpush1.msra.mxu0 %v289
    %318 = vmatprep.subr.mxu0 0.0
    %319 = vmatpush1.msra.mxu0 %v288
    %320 = vmatprep.subr.mxu0 0.0
    %321 = vmatpush1.msra.mxu0 %v287
    %322 = vmatprep.subr.mxu0 0.0
    %323 = vmatpush1.msra.mxu0 %v286
    %324 = vmatprep.subr.mxu0 0.0
    %325 = vmatpush1.msra.mxu0 %v285
    %326 = vmatprep.subr.mxu0 0.0
    %327 = vmatpush1.msra.mxu0 %v284
    %328 = vmatprep.subr.mxu0 0.0
    %329 = vmatpush1.msra.mxu0 %v283
    %330 = vmatprep.subr.mxu0 0.0
    %331 = vmatpush1.msra.mxu0 %v282
    %332 = vmatprep.subr.mxu0 0.0
    %333 = vmatpush1.msra.mxu0 %v281
    %334 = vmatprep.subr.mxu0 0.0
    %335 = vmatpush1.msra.mxu0 %v280
    %336 = vmatprep.subr.mxu0 0.0
    %337 = vmatpush1.msra.mxu0 %v279
    %338 = vmatprep.subr.mxu0 0.0
    %339 = vmatpush2.msra.mxu0 0.0
    %340 = vmatprep.subr.mxu0 0.0
    %341 = vmatpush2.msra.mxu0 0.0
    %342 = vmatprep.subr.mxu0 0.0
    %343 = vmatpush2.msra.mxu0 0.0
    %344 = vmatprep.subr.mxu0 0.0
    %345 = vmatpush2.msra.mxu0 0.0
    %346 = vmatprep.subr.mxu0 0.0
    %347 = vmatpush2.msra.mxu0 0.0
    %348 = vmatprep.subr.mxu0 0.0
    %349 = vmatpush2.msra.mxu0 0.0
    %350 = vmatprep.subr.mxu0 0.0
    %351 = vmatpush2.msra.mxu0 0.0
    %352 = vmatprep.subr.mxu0 0.0
    %353 = vmatpush2.msra.mxu0 0.0
    %354 = vmatprep.subr.mxu0 0.0
    %355 = vmatpush2.msra.mxu0 0.0
    %356 = vmatprep.subr.mxu0 0.0
    %357 = vmatpush2.msra.mxu0 0.0
    %358 = vmatprep.subr.mxu0 0.0
    %359 = vmatpush2.msra.mxu0 0.0
    %360 = vmatprep.subr.mxu0 0.0
    %361 = vmatpush2.msra.mxu0 0.0
    %362 = vmatprep.subr.mxu0 0.0
    %363 = vmatpush2.msra.mxu0 0.0
    %364 = vmatprep.subr.mxu0 0.0
    %365 = vmatpush2.msra.mxu0 0.0
    %366 = vmatprep.subr.mxu0 0.0
    %367 = vmatpush2.msra.mxu0 0.0
    %368 = vmatprep.subr.mxu0 0.0
    %369 = vmatpush2.msra.mxu0 0.0
    %370 = vmatprep.mubr.f32.mxu0 0.0
    %371 = vmatmul.mubr.f32.gmra.mxu0 %v304
    %v372 = vpop.f32.mrf.mxu0
    %v373 = vadd.f32 %v300, %v372
    %v374 = vpop.f32.mrf.mxu0
    %375 = vdwg.mxu0
    %vm376 = vcmask 1041408
    %v377 = vsel %vm376, %v373, 0.0
    %378 = vadd.xlane.f32.xlu0 %v377
    %v379 = vpop.xlane.xlu0 %378
    %v380 = vmul.f32 %v379, 0.03125
    %v381 = vmul.f32 %v373, %v373
    %v382 = vsel %vm376, %v381, 0.0
    %383 = vadd.xlane.f32.xlu0 %v382
    %v384 = vpop.xlane.xlu0 %383
    %v385 = vmul.f32 %v384, 0.03125
    %v386 = vmul.f32 %v380, %v380
    %v387 = vsub.f32 %v385, %v386
    %v388 = vsub.f32 %v373, %v380
    %v389 = vadd.f32 %v387, 1e-05
    %v390 = vrsqrt.pop %v389
    %v391 = vmul.f32 %v388, %v390
    %v392 = vld [vmem:[%s6] sm:$0x1]
    %v394 = vlaneseq
    %v395 = vshrl.u32 %v394, 7
    %v396 = vsub.s32 0, %v395
    %v397 = vrot.slane %v392, %v396
    %v399 = vmul.f32 %v391, %v397
    %v400 = vld [vmem:[%s7] sm:$0x1]
    %v402 = vlaneseq
    %v403 = vshrl.u32 %v402, 7
    %v404 = vsub.s32 0, %v403
    %v405 = vrot.slane %v400, %v404
    %v407 = vadd.f32 %v399, %v405
    %408 = vst [vmem:[#allocation8] sm:$0x3] %v407
    // Predicated region
    $region46: #{tpu_custom_call.1} parent=1 // pred_check
      _
    $region47: #{tpu_custom_call.1} parent=1 // pred_check_branch
      %410 = sbr.rel (0) target = $region49
    $region48: #{tpu_custom_call.1} parent=1 // pred_region
      %s412 = ssub.s32 32, 32
      %413 = vsyncadd [#allocation4], %s412
      %s415 = sshll.u32 [#allocation8], 4
      %s416 = int_to_ptr.vmem [resolvable:$true] %s415
      %418 = dma.vmem_to_hbm [thread:$0]  %s416, 32, %s8, [#allocation4]
    $region49: #{tpu_custom_call.1} parent=1 // pred_fallthru
      _
    // Predicated region
    $region50: #{tpu_custom_call.1} parent=1 // pred_check
      _
    $region51: #{tpu_custom_call.1} parent=1 // pred_check_branch
      %420 = sbr.rel (0) target = $region53
    $region52: #{tpu_custom_call.1} parent=1 // pred_region
      %421 = dma.done [#allocation4], 32
    $region53: #{tpu_custom_call.1} parent=1 // pred_fallthru
      _
    %422 = vsyncpa [#allocation3], 1
    %423 = vsyncpa [#allocation6], 1
    %424 = vsyncpa [#allocation4], 1

</llo_original>
